<compile_context>
chip_gen: v7x
topology: tpu7x:2x2x1
jax: 0.10.0
libtpu: 0.0.40
codegen_flags: <defaults>
</compile_context>

<pallas_src>
import jax
import jax.numpy as jnp
from jax.experimental import pallas as pl
from jax.experimental.pallas import tpu as pltpu

_LANE = 128              # pad output features to a multiple of this (lane-dense stores)
_ROW_TILE_QUANTUM = 16   # row-tile multiple: covers f32 (8) and bf16 (16) sublane packing


def _round_up(v, m):
    return ((v + m - 1) // m) * m


def _vmem_capacity_bytes():
    """Per-core VMEM capacity; conservative 64 MiB (v7x per-TC) if the query fails."""
    try:
        cap = int(pltpu.get_tpu_info().vmem_capacity_bytes)
        if cap > 0:
            return cap
    except Exception:
        pass
    return 64 * 1024 * 1024


def _choose_tiles(n, f_in, f_out_p, x_isz, w_isz, o_isz, b_isz, vmem_cap, tile_n_req):
    """Pick (tile_n, tile_f, single_buffer_weights) from the VMEM budget."""
    budget = int(0.75 * vmem_cap)

    # Column tile of W / bias / output: keep a (double-buffered) weight tile within
    # half the budget; if the full weight fits, keep it resident with a single buffer.
    w_budget = budget // 2
    max_tile_f = (w_budget // max(1, 2 * f_in * w_isz)) // _LANE * _LANE
    if max_tile_f >= f_out_p:
        tile_f, single_buf_w = f_out_p, True
    else:
        tile_f, single_buf_w = max(_LANE, max_tile_f), False
    w_bufs = 1 if single_buf_w else 2
    w_bytes = w_bufs * tile_f * (f_in * w_isz + b_isz)

    # Row tile from the remaining budget (double-buffered x-in and out tiles).
    per_row = 2 * (f_in * x_isz + tile_f * o_isz)
    tile_n = max(budget - w_bytes, per_row * _ROW_TILE_QUANTUM) // per_row
    tile_n = min(tile_n, 1024, _round_up(n, _ROW_TILE_QUANTUM))
    if tile_n_req is not None:
        tile_n = min(tile_n, tile_n_req)
    tile_n = max(_ROW_TILE_QUANTUM, (tile_n // _ROW_TILE_QUANTUM) * _ROW_TILE_QUANTUM)
    return int(tile_n), int(tile_f), single_buf_w


def mlp_layer_kernel(x_ref, w_ref, b_ref, o_ref):
    # Linear: x @ W^T + b. W is pre-transposed + lane-padded (and usually bf16);
    # the MXU accumulate is forced to f32, bias-add + ReLU stay in f32.
    y = jnp.dot(x_ref[...], w_ref[...], preferred_element_type=jnp.float32)
    y = y + b_ref[...]                 # broadcast [1, tile_f] over rows, f32
    y = jnp.maximum(y, 0.0)            # activation = ReLU
    o_ref[...] = y.astype(o_ref.dtype)


def prepare_params(weight, bias, compute_dtype=jnp.bfloat16):
    """One-time parameter prep (hoisted out of the forward path).

    weight: [F_out, F_in] (PyTorch nn.Linear layout); bias: [F_out].
    Returns (w_t [F_in, F_out_p] in compute_dtype, bias [1, F_out_p] in f32, f_out).
    """
    f_out, f_in = weight.shape
    f_out_p = _round_up(f_out, _LANE)
    w_t = jnp.zeros((f_in, f_out_p), compute_dtype).at[:, :f_out].set(
        weight.T.astype(compute_dtype))
    b2 = jnp.zeros((1, f_out_p), jnp.float32).at[0, :f_out].set(
        bias.astype(jnp.float32))
    return w_t, b2, f_out


def mlp_layer(x, w_t, b2, f_out, *, tile_n=None, out_dtype=None):
    """x: [N, F_in]; w_t: [F_in, F_out_p] (pre-transposed, lane-padded); b2: [1, F_out_p]."""
    n, f_in = x.shape
    f_in_w, f_out_p = w_t.shape
    assert f_in == f_in_w, "x feature dim must match prepared weight"

    out_dtype = jnp.dtype(out_dtype if out_dtype is not None else x.dtype)
    if x.dtype != w_t.dtype:
        # In a real pipeline the producer should emit x already in the compute dtype.
        x = x.astype(w_t.dtype)

    x_isz = jnp.dtype(x.dtype).itemsize
    w_isz = jnp.dtype(w_t.dtype).itemsize
    b_isz = jnp.dtype(b2.dtype).itemsize
    o_isz = out_dtype.itemsize

    vmem_cap = _vmem_capacity_bytes()
    tile_n_sel, tile_f, single_buf_w = _choose_tiles(
        n, f_in, f_out_p, x_isz, w_isz, o_isz, b_isz, vmem_cap, tile_n)

    grid_n = pl.cdiv(n, tile_n_sel)         # partial last row block handled by Pallas
    grid_f = pl.cdiv(f_out_p, tile_f)       # 1 when the weight is fully VMEM-resident

    cost = pl.CostEstimate(
        flops=int(2 * n * f_in * f_out_p),
        transcendentals=0,
        bytes_accessed=int(grid_f * n * f_in * x_isz + f_in * f_out_p * w_isz
                           + n * f_out_p * o_isz + f_out_p * b_isz),
    )

    def build(w_pipeline_mode, w_bufs):
        # Tight VMEM reservation: double-buffered x/out tiles + w_bufs weight/bias tiles.
        needed = (w_bufs * tile_f * (f_in * w_isz + b_isz)
                  + 2 * tile_n_sel * (f_in * x_isz + tile_f * o_isz))
        vmem_limit = int(min(0.85 * vmem_cap, needed + (4 << 20)))
        wb_kwargs = {} if w_pipeline_mode is None else {"pipeline_mode": w_pipeline_mode}
        return pl.pallas_call(
            mlp_layer_kernel,
            out_shape=jax.ShapeDtypeStruct((n, f_out_p), out_dtype),
            grid_spec=pltpu.PrefetchScalarGridSpec(
                num_scalar_prefetch=0,
                # Column tiles outer, row tiles inner → each W/b tile is loaded once
                # and reused across every row tile before moving to the next columns.
                grid=(grid_f, grid_n),
                in_specs=[
                    pl.BlockSpec((tile_n_sel, f_in), lambda j, i: (i, 0)),      # x rows
                    pl.BlockSpec((f_in, tile_f), lambda j, i: (0, j), **wb_kwargs),  # W
                    pl.BlockSpec((1, tile_f), lambda j, i: (0, j), **wb_kwargs),     # b
                ],
                out_specs=pl.BlockSpec((tile_n_sel, tile_f), lambda j, i: (i, j)),
            ),
            compiler_params=pltpu.CompilerParams(
                dimension_semantics=("parallel", "parallel"),  # megacore sharding
                vmem_limit_bytes=vmem_limit,
            ),
            cost_estimate=cost,
        )

    if single_buf_w:
        # Constant index_map → the second pipeline buffer for W/b is pure waste.
        try:
            out = build(pl.Buffered(1), 1)(x, w_t, b2)
        except Exception:
            out = build(None, 2)(x, w_t, b2)   # fallback: default double buffering
    else:
        out = build(None, 2)(x, w_t, b2)

    # Strip lane padding outside the kernel (rows are already exact: no host row pad).
    return out[:, :f_out]


def reference(x, weight, bias):
    return jnp.maximum(x @ weight.T + bias[None, :], 0.0)


if __name__ == "__main__":
    # Small shapes consistent with a GCN MLP layer: N nodes, in/out feature dims.
    N, F_IN, F_OUT = 64, 32, 64

    key = jax.random.PRNGKey(0)
    kx, kw, kb = jax.random.split(key, 3)

    x = jax.random.normal(kx, (N, F_IN), dtype=jnp.float32)

    # Deterministic param init mimicking nn.Linear: U(-1/sqrt(F_IN), 1/sqrt(F_IN))
    bound = 1.0 / (F_IN ** 0.5)
    weight = jax.random.uniform(kw, (F_OUT, F_IN), jnp.float32, -bound, bound)
    bias = jax.random.uniform(kb, (F_OUT,), jnp.float32, -bound, bound)

    # adj is accepted by the PyTorch forward but never used — not needed here.

    ref = reference(x, weight, bias)

    # 1) f32 compute path, auto tile_n (budget-derived) — tight tolerance check.
    w_t32, b32, _ = prepare_params(weight, bias, compute_dtype=jnp.float32)
    out32 = jax.block_until_ready(mlp_layer(x, w_t32, b32, F_OUT))
    assert out32.shape == (N, F_OUT)
    assert jnp.allclose(out32, ref, atol=1e-5, rtol=1e-5), "f32 mismatch vs reference"

    # 2) bf16 compute path (default), small row tile so the grid has >1 pipelined step.
    w_t, b2, _ = prepare_params(weight, bias)  # bf16 weights, f32 bias
    out = jax.block_until_ready(mlp_layer(x, w_t, b2, F_OUT, tile_n=16))
    assert out.shape == (N, F_OUT)
    assert out.dtype == jnp.float32
    assert jnp.allclose(out, ref, atol=5e-2, rtol=5e-2), "bf16 mismatch vs reference"

    print("KERNEL_OK")
</pallas_src>

<mosaic_0001>
module attributes {stable_mosaic.version = 11 : i64} {
  func.func @mlp_layer_kernel(%arg0: i32, %arg1: i32, %arg2: memref<64x32xf32, #tpu.memory_space<vmem>>, %arg3: memref<32x128xf32, #tpu.memory_space<vmem>>, %arg4: memref<1x128xf32, #tpu.memory_space<vmem>>, %arg5: memref<64x128xf32, #tpu.memory_space<vmem>>) attributes {dimension_semantics = [#tpu.dimension_semantics<parallel>, #tpu.dimension_semantics<parallel>], iteration_bounds = array<i64: 1, 1>, scalar_prefetch = 0 : i64, scratch_operands = 0 : i64, tpu.core_type = #tpu.core_type<tc>, window_params = [{transform_indices = @transform_0, window_bounds = array<i64: 64, 32>}, {pipeline_mode = #tpu.pipeline_mode<synchronous>, transform_indices = @transform_1, window_bounds = array<i64: 32, 128>}, {pipeline_mode = #tpu.pipeline_mode<synchronous>, transform_indices = @transform_2, window_bounds = array<i64: 1, 128>}, {transform_indices = @transform_3, window_bounds = array<i64: 64, 128>}]} {
    %c0 = arith.constant 0 : index
    %c0_0 = arith.constant 0 : index
    %0 = vector.load %arg2[%c0, %c0_0] : memref<64x32xf32, #tpu.memory_space<vmem>>, vector<64x32xf32>
    %c0_1 = arith.constant 0 : index
    %c0_2 = arith.constant 0 : index
    %1 = vector.load %arg3[%c0_1, %c0_2] : memref<32x128xf32, #tpu.memory_space<vmem>>, vector<32x128xf32>
    %cst = arith.constant dense<0.000000e+00> : vector<64x128xf32>
    %2 = tpu.matmul %0, %1, %cst {dimension_numbers = #tpu.dot_dimension_numbers<[1], [0], [0], [1], [0, 0, 1, 1], [], []>} : vector<64x32xf32>, vector<32x128xf32>, vector<64x128xf32> -> vector<64x128xf32>
    %c0_3 = arith.constant 0 : index
    %c0_4 = arith.constant 0 : index
    %3 = vector.load %arg4[%c0_3, %c0_4] : memref<1x128xf32, #tpu.memory_space<vmem>>, vector<1x128xf32>
    %4 = vector.broadcast %3 : vector<1x128xf32> to vector<64x128xf32>
    %5 = arith.addf %2, %4 : vector<64x128xf32>
    %cst_5 = arith.constant 0.000000e+00 : f32
    %6 = vector.broadcast %cst_5 : f32 to vector<64x128xf32>
    %7 = arith.maximumf %5, %6 : vector<64x128xf32>
    %c0_6 = arith.constant 0 : index
    %c0_7 = arith.constant 0 : index
    %8 = vector.load %arg5[%c0_6, %c0_7] : memref<64x128xf32, #tpu.memory_space<vmem>>, vector<64x128xf32>
    tpu.vector_store %arg5[%c0_6, %c0_7], %7 {strides = array<i32>} : memref<64x128xf32, #tpu.memory_space<vmem>>, vector<64x128xf32>,
    return
  }
  func.func @transform_0(%arg0: i32, %arg1: i32) -> (i32, i32) {
    %c0_i32 = arith.constant 0 : i32
    %c0_i32_0 = arith.constant 0 : i32
    return %arg1, %c0_i32 : i32, i32
  }
  func.func @transform_1(%arg0: i32, %arg1: i32) -> (i32, i32) {
    %c0_i32 = arith.constant 0 : i32
    %c0_i32_0 = arith.constant 0 : i32
    return %c0_i32, %arg0 : i32, i32
  }
  func.func @transform_2(%arg0: i32, %arg1: i32) -> (i32, i32) {
    %c0_i32 = arith.constant 0 : i32
    %c0_i32_0 = arith.constant 0 : i32
    return %c0_i32, %arg0 : i32, i32
  }
  func.func @transform_3(%arg0: i32, %arg1: i32) -> (i32, i32) {
    %c0_i32 = arith.constant 0 : i32
    return %arg1, %arg0 : i32, i32
  }
}

module attributes {stable_mosaic.version = 11 : i64} {
  func.func @mlp_layer_kernel(%arg0: i32, %arg1: i32, %arg2: memref<64x32xf32, #tpu.memory_space<vmem>>, %arg3: memref<32x128xf32, #tpu.memory_space<vmem>>, %arg4: memref<1x128xf32, #tpu.memory_space<vmem>>, %arg5: memref<64x128xf32, #tpu.memory_space<vmem>>) attributes {dimension_semantics = [#tpu.dimension_semantics<parallel>, #tpu.dimension_semantics<parallel>], iteration_bounds = array<i64: 1, 1>, scalar_prefetch = 0 : i64, scratch_operands = 0 : i64, tpu.core_type = #tpu.core_type<tc>, window_params = [{transform_indices = @transform_0, window_bounds = array<i64: 64, 32>}, {transform_indices = @transform_1, window_bounds = array<i64: 32, 128>}, {transform_indices = @transform_2, window_bounds = array<i64: 1, 128>}, {transform_indices = @transform_3, window_bounds = array<i64: 64, 128>}]} {
    %c0 = arith.constant 0 : index
    %c0_0 = arith.constant 0 : index
    %0 = vector.load %arg2[%c0, %c0_0] : memref<64x32xf32, #tpu.memory_space<vmem>>, vector<64x32xf32>
    %c0_1 = arith.constant 0 : index
    %c0_2 = arith.constant 0 : index
    %1 = vector.load %arg3[%c0_1, %c0_2] : memref<32x128xf32, #tpu.memory_space<vmem>>, vector<32x128xf32>
    %cst = arith.constant dense<0.000000e+00> : vector<64x128xf32>
    %2 = tpu.matmul %0, %1, %cst {dimension_numbers = #tpu.dot_dimension_numbers<[1], [0], [0], [1], [0, 0, 1, 1], [], []>} : vector<64x32xf32>, vector<32x128xf32>, vector<64x128xf32> -> vector<64x128xf32>
    %c0_3 = arith.constant 0 : index
    %c0_4 = arith.constant 0 : index
    %3 = vector.load %arg4[%c0_3, %c0_4] : memref<1x128xf32, #tpu.memory_space<vmem>>, vector<1x128xf32>
    %4 = vector.broadcast %3 : vector<1x128xf32> to vector<64x128xf32>
    %5 = arith.addf %2, %4 : vector<64x128xf32>
    %cst_5 = arith.constant 0.000000e+00 : f32
    %6 = vector.broadcast %cst_5 : f32 to vector<64x128xf32>
    %7 = arith.maximumf %5, %6 : vector<64x128xf32>
    %c0_6 = arith.constant 0 : index
    %c0_7 = arith.constant 0 : index
    %8 = vector.load %arg5[%c0_6, %c0_7] : memref<64x128xf32, #tpu.memory_space<vmem>>, vector<64x128xf32>
    tpu.vector_store %arg5[%c0_6, %c0_7], %7 {strides = array<i32>} : memref<64x128xf32, #tpu.memory_space<vmem>>, vector<64x128xf32>,
    return
  }
  func.func @transform_0(%arg0: i32, %arg1: i32) -> (i32, i32) {
    %c0_i32 = arith.constant 0 : i32
    %c0_i32_0 = arith.constant 0 : i32
    return %arg1, %c0_i32 : i32, i32
  }
  func.func @transform_1(%arg0: i32, %arg1: i32) -> (i32, i32) {
    %c0_i32 = arith.constant 0 : i32
    %c0_i32_0 = arith.constant 0 : i32
    return %c0_i32, %arg0 : i32, i32
  }
  func.func @transform_2(%arg0: i32, %arg1: i32) -> (i32, i32) {
    %c0_i32 = arith.constant 0 : i32
    %c0_i32_0 = arith.constant 0 : i32
    return %c0_i32, %arg0 : i32, i32
  }
  func.func @transform_3(%arg0: i32, %arg1: i32) -> (i32, i32) {
    %c0_i32 = arith.constant 0 : i32
    return %arg1, %arg0 : i32, i32
  }
}

</mosaic_0001>

<llo_original>
// kernel: tpu_custom_call.1
$region0: #{tpu_custom_call.1}
  #allocation0 [shape = 'u32[]', space=smem, size = 0x4, offset = 0x4, fixed_abs, tag = 'smem constant byte address 0x4 - core index']
  #allocation1 [shape = 'u32[144,128]{1,0:T(1,128)}', space=vmem, size = 0x12000, scoped, tag = 'internal scratch']
  %s0 = inlined_call_operand.vmem [shape: f32[64,32], index: 0, kind: input, shape index: {}]
  %s1 = inlined_call_operand.vmem [shape: f32[32,128], index: 1, kind: input, shape index: {}]
  %s2 = inlined_call_operand.vmem [shape: f32[1,128], index: 2, kind: input, shape index: {}]
  %s3 = inlined_call_operand.hbm [shape: f32[64,128], index: 3, kind: output, shape index: {}]
  %s4 = sld [smem:[#allocation0]]
  $region22: #{tpu_custom_call.1} parent=0
    _
  %s6 = ssub.s32 1, %s4
  %s7 = scalar_select 0, %s6, %s4
  $region1: #{tpu_custom_call.1} parent=0
    #allocation2 [shape = 'u8[32768]{0}', space=vmem, size = 0x8000, scoped, tag = 'output window, operand 0, single buffered']
    #allocation3 [shape = 's32[1]{0}', space=sflag, size = 0x4, scoped, tag = 'scoped memory for tpu_custom_call.1']
    %8 = vsyncpa [#allocation3], 0
    // Predicated region
    $region2: #{tpu_custom_call.1} parent=1 // pred_check
      _
    $region3: #{tpu_custom_call.1} parent=1 // pred_check_branch
      %10 = sbr.rel (0) target = $region5
    $region4: #{tpu_custom_call.1} parent=1 // pred_region
      _
    $region5: #{tpu_custom_call.1} parent=1 // pred_fallthru
      _
    // Predicated region
    $region6: #{tpu_custom_call.1} parent=1 // pred_check
      _
    $region7: #{tpu_custom_call.1} parent=1 // pred_check_branch
      %12 = sbr.rel (0) target = $region9
    $region8: #{tpu_custom_call.1} parent=1 // pred_region
      _
    $region9: #{tpu_custom_call.1} parent=1 // pred_fallthru
      _
    // Predicated region
    $region10: #{tpu_custom_call.1} parent=1 // pred_check
      _
    $region11: #{tpu_custom_call.1} parent=1 // pred_check_branch
      %14 = sbr.rel (0) target = $region13
    $region12: #{tpu_custom_call.1} parent=1 // pred_region
      _
    $region13: #{tpu_custom_call.1} parent=1 // pred_fallthru
      _
    %v15 = vld [vmem:[%s0] sm:$0xff]
    %v16 = vld [vmem:[%s0 + $0x8] sm:$0xff]
    %v17 = vld [vmem:[%s0 + $0x10] sm:$0xff]
    %v18 = vld [vmem:[%s0 + $0x18] sm:$0xff]
    %v19 = vld [vmem:[%s0 + $0x20] sm:$0xff]
    %v20 = vld [vmem:[%s0 + $0x28] sm:$0xff]
    %v21 = vld [vmem:[%s0 + $0x30] sm:$0xff]
    %v22 = vld [vmem:[%s0 + $0x38] sm:$0xff]
    %v23 = vld [vmem:[%s1] sm:$0xff]
    %v24 = vld [vmem:[%s1 + $0x8] sm:$0xff]
    %v25 = vld [vmem:[%s1 + $0x10] sm:$0xff]
    %v26 = vld [vmem:[%s1 + $0x18] sm:$0xff]
    %v27 = vld [vmem:[%s2] sm:$0x1]
    %v29 = vlaneseq
    %v30 = vshrl.u32 %v29, 7
    %v31 = vsub.s32 0, %v30
    %v32 = vrot.slane %v27, %v31
    %vm34 = vcmask 261120
    %v36 = vsel %vm34, %v15, 0
    %v39 = vsel %vm34, %v16, 0
    %v42 = vsel %vm34, %v17, 0
    %v45 = vsel %vm34, %v18, 0
    %v48 = vsel %vm34, %v19, 0
    %v51 = vsel %vm34, %v20, 0
    %v54 = vsel %vm34, %v21, 0
    %v57 = vsel %vm34, %v22, 0
    %59 = vmatprep.subr.mxu0 0.0
    %60 = vmatpush1.msra.mxu0 %v23
    %61 = vmatprep.subr.mxu0 0.0
    %62 = vmatpush1.msra.mxu0 %v24
    %63 = vmatprep.subr.mxu0 0.0
    %64 = vmatpush1.msra.mxu0 %v25
    %65 = vmatprep.subr.mxu0 0.0
    %66 = vmatpush1.msra.mxu0 %v26
    %67 = vmatprep.subr.mxu0 0.0
    %68 = vmatpush1.msra.mxu0 0.0
    %69 = vmatprep.subr.mxu0 0.0
    %70 = vmatpush1.msra.mxu0 0.0
    %71 = vmatprep.subr.mxu0 0.0
    %72 = vmatpush1.msra.mxu0 0.0
    %73 = vmatprep.subr.mxu0 0.0
    %74 = vmatpush1.msra.mxu0 0.0
    %75 = vmatprep.subr.mxu0 0.0
    %76 = vmatpush1.msra.mxu0 0.0
    %77 = vmatprep.subr.mxu0 0.0
    %78 = vmatpush1.msra.mxu0 0.0
    %79 = vmatprep.subr.mxu0 0.0
    %80 = vmatpush1.msra.mxu0 0.0
    %81 = vmatprep.subr.mxu0 0.0
    %82 = vmatpush1.msra.mxu0 0.0
    %83 = vmatprep.subr.mxu0 0.0
    %84 = vmatpush1.msra.mxu0 0.0
    %85 = vmatprep.subr.mxu0 0.0
    %86 = vmatpush1.msra.mxu0 0.0
    %87 = vmatprep.subr.mxu0 0.0
    %88 = vmatpush1.msra.mxu0 0.0
    %89 = vmatprep.subr.mxu0 0.0
    %90 = vmatpush1.msra.mxu0 0.0
    %91 = vmatprep.subr.mxu0 0.0
    %92 = vmatpush1.msra.mxu0 0.0
    %93 = vmatprep.subr.mxu0 0.0
    %94 = vmatpush1.msra.mxu0 0.0
    %95 = vmatprep.subr.mxu0 0.0
    %96 = vmatpush1.msra.mxu0 0.0
    %97 = vmatprep.subr.mxu0 0.0
    %98 = vmatpush1.msra.mxu0 0.0
    %99 = vmatprep.subr.mxu0 0.0
    %100 = vmatpush1.msra.mxu0 0.0
    %101 = vmatprep.subr.mxu0 0.0
    %102 = vmatpush1.msra.mxu0 0.0
    %103 = vmatprep.subr.mxu0 0.0
    %104 = vmatpush1.msra.mxu0 0.0
    %105 = vmatprep.subr.mxu0 0.0
    %106 = vmatpush1.msra.mxu0 0.0
    %107 = vmatprep.subr.mxu0 0.0
    %108 = vmatpush1.msra.mxu0 0.0
    %109 = vmatprep.subr.mxu0 0.0
    %110 = vmatpush1.msra.mxu0 0.0
    %111 = vmatprep.subr.mxu0 0.0
    %112 = vmatpush1.msra.mxu0 0.0
    %113 = vmatprep.subr.mxu0 0.0
    %114 = vmatpush1.msra.mxu0 0.0
    %115 = vmatprep.subr.mxu0 0.0
    %116 = vmatpush1.msra.mxu0 0.0
    %117 = vmatprep.subr.mxu0 0.0
    %118 = vmatpush1.msra.mxu0 0.0
    %119 = vmatprep.subr.mxu0 0.0
    %120 = vmatpush1.msra.mxu0 0.0
    %121 = vmatprep.subr.mxu0 0.0
    %122 = vmatpush1.msra.mxu0 0.0
    %123 = vmatprep.mubr.f32.mxu0 0.0
    %124 = vmatmul.mubr.f32.gmra.mrb[0].mxu0 %v36
    %v125 = vpop.f32.mrb[0].mxu0
    %v126 = vadd.f32 %v32, %v125
    %v127 = vpop.f32.mrb[0].mxu0
    %128 = vmatprep.mubr.f32.mxu0 0.0
    %129 = vmatmul.mubr.f32.gmra.mrb[0].mxu0 %v39
    %v130 = vpop.f32.mrb[0].mxu0
    %v131 = vadd.f32 %v32, %v130
    %v132 = vpop.f32.mrb[0].mxu0
    %133 = vmatprep.mubr.f32.mxu0 0.0
    %134 = vmatmul.mubr.f32.gmra.mrb[0].mxu0 %v42
    %v135 = vpop.f32.mrb[0].mxu0
    %v136 = vadd.f32 %v32, %v135
    %v137 = vpop.f32.mrb[0].mxu0
    %138 = vmatprep.mubr.f32.mxu0 0.0
    %139 = vmatmul.mubr.f32.gmra.mrb[0].mxu0 %v45
    %v140 = vpop.f32.mrb[0].mxu0
    %v141 = vadd.f32 %v32, %v140
    %v142 = vpop.f32.mrb[0].mxu0
    %143 = vmatprep.mubr.f32.mxu0 0.0
    %144 = vmatmul.mubr.f32.gmra.mrb[0].mxu0 %v48
    %v145 = vpop.f32.mrb[0].mxu0
    %v146 = vadd.f32 %v32, %v145
    %v147 = vpop.f32.mrb[0].mxu0
    %148 = vmatprep.mubr.f32.mxu0 0.0
    %149 = vmatmul.mubr.f32.gmra.mrb[0].mxu0 %v51
    %v150 = vpop.f32.mrb[0].mxu0
    %v151 = vadd.f32 %v32, %v150
    %v152 = vpop.f32.mrb[0].mxu0
    %153 = vmatprep.mubr.f32.mxu0 0.0
    %154 = vmatmul.mubr.f32.gmra.mrb[0].mxu0 %v54
    %v155 = vpop.f32.mrb[0].mxu0
    %v156 = vadd.f32 %v32, %v155
    %v157 = vpop.f32.mrb[0].mxu0
    %158 = vmatprep.mubr.f32.mxu0 0.0
    %159 = vmatmul.mubr.f32.gmra.mrb[0].mxu0 %v57
    %v160 = vpop.f32.mrb[0].mxu0
    %v161 = vadd.f32 %v32, %v160
    %v162 = vpop.f32.mrb[0].mxu0
    %163 = vdwg.mxu0
    %v164 = vmax.f32 %v126, 0.0
    %v165 = vmax.f32 %v131, 0.0
    %v166 = vmax.f32 %v136, 0.0
    %v167 = vmax.f32 %v141, 0.0
    %v168 = vmax.f32 %v146, 0.0
    %v169 = vmax.f32 %v151, 0.0
    %v170 = vmax.f32 %v156, 0.0
    %v171 = vmax.f32 %v161, 0.0
    %172 = vst [vmem:[#allocation2] sm:$0xff] %v164
    %173 = vst [vmem:[#allocation2 + $0x8] sm:$0xff] %v165
    %174 = vst [vmem:[#allocation2 + $0x10] sm:$0xff] %v166
    %175 = vst [vmem:[#allocation2 + $0x18] sm:$0xff] %v167
    %176 = vst [vmem:[#allocation2 + $0x20] sm:$0xff] %v168
    %177 = vst [vmem:[#allocation2 + $0x28] sm:$0xff] %v169
    %178 = vst [vmem:[#allocation2 + $0x30] sm:$0xff] %v170
    %179 = vst [vmem:[#allocation2 + $0x38] sm:$0xff] %v171
    // Predicated region
    $region14: #{tpu_custom_call.1} parent=1 // pred_check
      _
    $region15: #{tpu_custom_call.1} parent=1 // pred_check_branch
      %181 = sbr.rel (0) target = $region17
    $region16: #{tpu_custom_call.1} parent=1 // pred_region
      %s183 = ssub.s32 1024, 1024
      %184 = vsyncadd [#allocation3], %s183
      %s185 = sshll.u32 [#allocation2], 4
      %s186 = int_to_ptr.vmem [resolvable:$true] %s185
      %191 = dma.vmem_to_hbm [thread:$0]  %s186, 1024, %s3, [#allocation3], 128, 128, 8
    $region17: #{tpu_custom_call.1} parent=1 // pred_fallthru
      _
    // Predicated region
    $region18: #{tpu_custom_call.1} parent=1 // pred_check
      _
    $region19: #{tpu_custom_call.1} parent=1 // pred_check_branch
      %193 = sbr.rel (0) target = $region21
    $region20: #{tpu_custom_call.1} parent=1 // pred_region
      %194 = dma.done [#allocation3], 1024
    $region21: #{tpu_custom_call.1} parent=1 // pred_fallthru
      _
    %195 = vsyncpa [#allocation3], 1

// kernel: tpu_custom_call.1
$region0: #{tpu_custom_call.1}
  #allocation0 [shape = 'u32[]', space=smem, size = 0x4, offset = 0x4, fixed_abs, tag = 'smem constant byte address 0x4 - core index']
  #allocation1 [shape = 'u32[144,128]{1,0:T(1,128)}', space=vmem, size = 0x12000, scoped, tag = 'internal scratch']
  %s0 = inlined_call_operand.vmem [shape: f32[64,32], index: 0, kind: input, shape index: {}]
  %s1 = inlined_call_operand.vmem [shape: f32[32,128], index: 1, kind: input, shape index: {}]
  %s2 = inlined_call_operand.vmem [shape: f32[1,128], index: 2, kind: input, shape index: {}]
  %s3 = inlined_call_operand.hbm [shape: f32[64,128], index: 3, kind: output, shape index: {}]
  %s4 = sld [smem:[#allocation0]]
  $region22: #{tpu_custom_call.1} parent=0
    _
  %s6 = ssub.s32 1, %s4
  %s7 = scalar_select 0, %s6, %s4
  $region1: #{tpu_custom_call.1} parent=0
    #allocation2 [shape = 'u8[32768]{0}', space=vmem, size = 0x8000, scoped, tag = 'output window, operand 0, single buffered']
    #allocation3 [shape = 's32[1]{0}', space=sflag, size = 0x4, scoped, tag = 'scoped memory for tpu_custom_call.1']
    %8 = vsyncpa [#allocation3], 0
    // Predicated region
    $region2: #{tpu_custom_call.1} parent=1 // pred_check
      _
    $region3: #{tpu_custom_call.1} parent=1 // pred_check_branch
      %10 = sbr.rel (0) target = $region5
    $region4: #{tpu_custom_call.1} parent=1 // pred_region
      _
    $region5: #{tpu_custom_call.1} parent=1 // pred_fallthru
      _
    // Predicated region
    $region6: #{tpu_custom_call.1} parent=1 // pred_check
      _
    $region7: #{tpu_custom_call.1} parent=1 // pred_check_branch
      %12 = sbr.rel (0) target = $region9
    $region8: #{tpu_custom_call.1} parent=1 // pred_region
      _
    $region9: #{tpu_custom_call.1} parent=1 // pred_fallthru
      _
    // Predicated region
    $region10: #{tpu_custom_call.1} parent=1 // pred_check
      _
    $region11: #{tpu_custom_call.1} parent=1 // pred_check_branch
      %14 = sbr.rel (0) target = $region13
    $region12: #{tpu_custom_call.1} parent=1 // pred_region
      _
    $region13: #{tpu_custom_call.1} parent=1 // pred_fallthru
      _
    %v15 = vld [vmem:[%s0] sm:$0xff]
    %v16 = vld [vmem:[%s0 + $0x8] sm:$0xff]
    %v17 = vld [vmem:[%s0 + $0x10] sm:$0xff]
    %v18 = vld [vmem:[%s0 + $0x18] sm:$0xff]
    %v19 = vld [vmem:[%s0 + $0x20] sm:$0xff]
    %v20 = vld [vmem:[%s0 + $0x28] sm:$0xff]
    %v21 = vld [vmem:[%s0 + $0x30] sm:$0xff]
    %v22 = vld [vmem:[%s0 + $0x38] sm:$0xff]
    %v23 = vld [vmem:[%s1] sm:$0xff]
    %v24 = vld [vmem:[%s1 + $0x8] sm:$0xff]
    %v25 = vld [vmem:[%s1 + $0x10] sm:$0xff]
    %v26 = vld [vmem:[%s1 + $0x18] sm:$0xff]
    %v27 = vld [vmem:[%s2] sm:$0x1]
    %v29 = vlaneseq
    %v30 = vshrl.u32 %v29, 7
    %v31 = vsub.s32 0, %v30
    %v32 = vrot.slane %v27, %v31
    %vm34 = vcmask 261120
    %v36 = vsel %vm34, %v15, 0
    %v39 = vsel %vm34, %v16, 0
    %v42 = vsel %vm34, %v17, 0
    %v45 = vsel %vm34, %v18, 0
    %v48 = vsel %vm34, %v19, 0
    %v51 = vsel %vm34, %v20, 0
    %v54 = vsel %vm34, %v21, 0
    %v57 = vsel %vm34, %v22, 0
    %59 = vmatprep.subr.mxu0 0.0
    %60 = vmatpush1.msra.mxu0 %v23
    %61 = vmatprep.subr.mxu0 0.0
    %62 = vmatpush1.msra.mxu0 %v24
    %63 = vmatprep.subr.mxu0 0.0
    %64 = vmatpush1.msra.mxu0 %v25
    %65 = vmatprep.subr.mxu0 0.0
    %66 = vmatpush1.msra.mxu0 %v26
    %67 = vmatprep.subr.mxu0 0.0
    %68 = vmatpush1.msra.mxu0 0.0
    %69 = vmatprep.subr.mxu0 0.0
    %70 = vmatpush1.msra.mxu0 0.0
    %71 = vmatprep.subr.mxu0 0.0
    %72 = vmatpush1.msra.mxu0 0.0
    %73 = vmatprep.subr.mxu0 0.0
    %74 = vmatpush1.msra.mxu0 0.0
    %75 = vmatprep.subr.mxu0 0.0
    %76 = vmatpush1.msra.mxu0 0.0
    %77 = vmatprep.subr.mxu0 0.0
    %78 = vmatpush1.msra.mxu0 0.0
    %79 = vmatprep.subr.mxu0 0.0
    %80 = vmatpush1.msra.mxu0 0.0
    %81 = vmatprep.subr.mxu0 0.0
    %82 = vmatpush1.msra.mxu0 0.0
    %83 = vmatprep.subr.mxu0 0.0
    %84 = vmatpush1.msra.mxu0 0.0
    %85 = vmatprep.subr.mxu0 0.0
    %86 = vmatpush1.msra.mxu0 0.0
    %87 = vmatprep.subr.mxu0 0.0
    %88 = vmatpush1.msra.mxu0 0.0
    %89 = vmatprep.subr.mxu0 0.0
    %90 = vmatpush1.msra.mxu0 0.0
    %91 = vmatprep.subr.mxu0 0.0
    %92 = vmatpush1.msra.mxu0 0.0
    %93 = vmatprep.subr.mxu0 0.0
    %94 = vmatpush1.msra.mxu0 0.0
    %95 = vmatprep.subr.mxu0 0.0
    %96 = vmatpush1.msra.mxu0 0.0
    %97 = vmatprep.subr.mxu0 0.0
    %98 = vmatpush1.msra.mxu0 0.0
    %99 = vmatprep.subr.mxu0 0.0
    %100 = vmatpush1.msra.mxu0 0.0
    %101 = vmatprep.subr.mxu0 0.0
    %102 = vmatpush1.msra.mxu0 0.0
    %103 = vmatprep.subr.mxu0 0.0
    %104 = vmatpush1.msra.mxu0 0.0
    %105 = vmatprep.subr.mxu0 0.0
    %106 = vmatpush1.msra.mxu0 0.0
    %107 = vmatprep.subr.mxu0 0.0
    %108 = vmatpush1.msra.mxu0 0.0
    %109 = vmatprep.subr.mxu0 0.0
    %110 = vmatpush1.msra.mxu0 0.0
    %111 = vmatprep.subr.mxu0 0.0
    %112 = vmatpush1.msra.mxu0 0.0
    %113 = vmatprep.subr.mxu0 0.0
    %114 = vmatpush1.msra.mxu0 0.0
    %115 = vmatprep.subr.mxu0 0.0
    %116 = vmatpush1.msra.mxu0 0.0
    %117 = vmatprep.subr.mxu0 0.0
    %118 = vmatpush1.msra.mxu0 0.0
    %119 = vmatprep.subr.mxu0 0.0
    %120 = vmatpush1.msra.mxu0 0.0
    %121 = vmatprep.subr.mxu0 0.0
    %122 = vmatpush1.msra.mxu0 0.0
    %123 = vmatprep.mubr.f32.mxu0 0.0
    %124 = vmatmul.mubr.f32.gmra.mrb[0].mxu0 %v36
    %v125 = vpop.f32.mrb[0].mxu0
    %v126 = vadd.f32 %v32, %v125
    %v127 = vpop.f32.mrb[0].mxu0
    %128 = vmatprep.mubr.f32.mxu0 0.0
    %129 = vmatmul.mubr.f32.gmra.mrb[0].mxu0 %v39
    %v130 = vpop.f32.mrb[0].mxu0
    %v131 = vadd.f32 %v32, %v130
    %v132 = vpop.f32.mrb[0].mxu0
    %133 = vmatprep.mubr.f32.mxu0 0.0
    %134 = vmatmul.mubr.f32.gmra.mrb[0].mxu0 %v42
    %v135 = vpop.f32.mrb[0].mxu0
    %v136 = vadd.f32 %v32, %v135
    %v137 = vpop.f32.mrb[0].mxu0
    %138 = vmatprep.mubr.f32.mxu0 0.0
    %139 = vmatmul.mubr.f32.gmra.mrb[0].mxu0 %v45
    %v140 = vpop.f32.mrb[0].mxu0
    %v141 = vadd.f32 %v32, %v140
    %v142 = vpop.f32.mrb[0].mxu0
    %143 = vmatprep.mubr.f32.mxu0 0.0
    %144 = vmatmul.mubr.f32.gmra.mrb[0].mxu0 %v48
    %v145 = vpop.f32.mrb[0].mxu0
    %v146 = vadd.f32 %v32, %v145
    %v147 = vpop.f32.mrb[0].mxu0
    %148 = vmatprep.mubr.f32.mxu0 0.0
    %149 = vmatmul.mubr.f32.gmra.mrb[0].mxu0 %v51
    %v150 = vpop.f32.mrb[0].mxu0
    %v151 = vadd.f32 %v32, %v150
    %v152 = vpop.f32.mrb[0].mxu0
    %153 = vmatprep.mubr.f32.mxu0 0.0
    %154 = vmatmul.mubr.f32.gmra.mrb[0].mxu0 %v54
    %v155 = vpop.f32.mrb[0].mxu0
    %v156 = vadd.f32 %v32, %v155
    %v157 = vpop.f32.mrb[0].mxu0
    %158 = vmatprep.mubr.f32.mxu0 0.0
    %159 = vmatmul.mubr.f32.gmra.mrb[0].mxu0 %v57
    %v160 = vpop.f32.mrb[0].mxu0
    %v161 = vadd.f32 %v32, %v160
    %v162 = vpop.f32.mrb[0].mxu0
    %163 = vdwg.mxu0
    %v164 = vmax.f32 %v126, 0.0
    %v165 = vmax.f32 %v131, 0.0
    %v166 = vmax.f32 %v136, 0.0
    %v167 = vmax.f32 %v141, 0.0
    %v168 = vmax.f32 %v146, 0.0
    %v169 = vmax.f32 %v151, 0.0
    %v170 = vmax.f32 %v156, 0.0
    %v171 = vmax.f32 %v161, 0.0
    %172 = vst [vmem:[#allocation2] sm:$0xff] %v164
    %173 = vst [vmem:[#allocation2 + $0x8] sm:$0xff] %v165
    %174 = vst [vmem:[#allocation2 + $0x10] sm:$0xff] %v166
    %175 = vst [vmem:[#allocation2 + $0x18] sm:$0xff] %v167
    %176 = vst [vmem:[#allocation2 + $0x20] sm:$0xff] %v168
    %177 = vst [vmem:[#allocation2 + $0x28] sm:$0xff] %v169
    %178 = vst [vmem:[#allocation2 + $0x30] sm:$0xff] %v170
    %179 = vst [vmem:[#allocation2 + $0x38] sm:$0xff] %v171
    // Predicated region
    $region14: #{tpu_custom_call.1} parent=1 // pred_check
      _
    $region15: #{tpu_custom_call.1} parent=1 // pred_check_branch
      %181 = sbr.rel (0) target = $region17
    $region16: #{tpu_custom_call.1} parent=1 // pred_region
      %s183 = ssub.s32 1024, 1024
      %184 = vsyncadd [#allocation3], %s183
      %s185 = sshll.u32 [#allocation2], 4
      %s186 = int_to_ptr.vmem [resolvable:$true] %s185
      %191 = dma.vmem_to_hbm [thread:$0]  %s186, 1024, %s3, [#allocation3], 128, 128, 8
    $region17: #{tpu_custom_call.1} parent=1 // pred_fallthru
      _
    // Predicated region
    $region18: #{tpu_custom_call.1} parent=1 // pred_check
      _
    $region19: #{tpu_custom_call.1} parent=1 // pred_check_branch
      %193 = sbr.rel (0) target = $region21
    $region20: #{tpu_custom_call.1} parent=1 // pred_region
      %194 = dma.done [#allocation3], 1024
    $region21: #{tpu_custom_call.1} parent=1 // pred_fallthru
      _
    %195 = vsyncpa [#allocation3], 1

</llo_original>
